<compile_context>
chip_gen: v7x
topology: tpu7x:2x2x1
jax: 0.10.0
libtpu: 0.0.40
codegen_flags: <defaults>
</compile_context>

<pallas_src>
import functools

import jax
import jax.numpy as jnp
from jax.experimental import pallas as pl
from jax.experimental.pallas import tpu as pltpu


def _recurrent_cycle_kernel(idx_ref, data_ref, out_ref, *, cycle_len, length, block_b):
    g = pl.program_id(0)
    data = data_ref[...]  # (cycle_len, channel), resident in VMEM

    # Grid-step work that is identical for every batch row in the block
    # (hoisted out of the per-batch loop). Only `length` rem ops, not
    # length * cycle_len as before.
    t_iota = jax.lax.broadcasted_iota(jnp.int32, (length, 1), 0)          # (length, 1)
    t_mod = jax.lax.rem(t_iota, jnp.int32(cycle_len))                     # (length, 1)
    c_iota = jax.lax.broadcasted_iota(jnp.int32, (length, cycle_len), 1)  # (length, cycle_len)

    for bb in range(block_b):  # static, small unrolled loop over batch rows
        start = idx_ref[g * block_b + bb]            # SMEM scalar read
        # Python-style modulo on the scalar unit -> non-negative result even for
        # negative `index` (matches torch.remainder semantics).
        start_mod = jnp.mod(start, jnp.int32(cycle_len))

        s = start_mod + t_mod                        # (length, 1), in [0, 2*cycle_len)
        row = jnp.where(s >= cycle_len, s - cycle_len, s)   # wrap with one select

        onehot = (row == c_iota).astype(data.dtype)  # (length, cycle_len)
        tile = jnp.dot(onehot, data, preferred_element_type=jnp.float32)  # (length, channel)
        out_ref[bb] = tile.astype(out_ref.dtype)


def recurrent_cycle(index, data, length, *, block_b=8):
    """index: (B,) int32, data: (cycle_len, channel), length: python int."""
    B = index.shape[0]
    cycle_len, channel = data.shape
    itemsize = data.dtype.itemsize

    # Batch rows per grid step. Keep >= 2 grid steps when B allows (v7x has two
    # TensorCores sharing HBM bandwidth and shards the "parallel" axis).
    block_b = max(1, min(block_b, B))
    nb = pl.cdiv(B, block_b)
    b_pad = nb * block_b

    index_pad = index.astype(jnp.int32)
    if b_pad != B:
        index_pad = jnp.pad(index_pad, (0, b_pad - B))

    kernel = functools.partial(
        _recurrent_cycle_kernel, cycle_len=cycle_len, length=length, block_b=block_b
    )

    out_block_bytes = block_b * length * channel * itemsize
    table_bytes = cycle_len * channel * itemsize
    # Double-buffered output block + resident table + one-hot/temp headroom.
    vmem_limit = int(
        max(
            16 * 1024 * 1024,
            2 * out_block_bytes + 2 * table_bytes + 4 * length * cycle_len * 4 + (2 << 20),
        )
    )

    cost = pl.CostEstimate(
        flops=2 * b_pad * length * cycle_len * channel,
        transcendentals=0,
        bytes_accessed=int(
            b_pad * length * channel * itemsize + table_bytes + b_pad * 4
        ),
    )

    out = pl.pallas_call(
        kernel,
        out_shape=jax.ShapeDtypeStruct((b_pad, length, channel), data.dtype),
        grid_spec=pltpu.PrefetchScalarGridSpec(
            num_scalar_prefetch=1,  # `index` lands in SMEM
            grid=(nb,),
            in_specs=[
                # Full cycle table, resident every grid step.
                pl.BlockSpec((cycle_len, channel), lambda g, idx_ref: (0, 0)),
            ],
            out_specs=pl.BlockSpec(
                (block_b, length, channel), lambda g, idx_ref: (g, 0, 0)
            ),
        ),
        compiler_params=pltpu.CompilerParams(
            dimension_semantics=("parallel",),
            vmem_limit_bytes=vmem_limit,
        ),
        cost_estimate=cost,
    )(index_pad, data)

    return out[:B] if b_pad != B else out


def recurrent_cycle_ref(index, data, length):
    cycle_len = data.shape[0]
    gather_index = (index[:, None] + jnp.arange(length)[None, :]) % cycle_len
    return data[gather_index]


if __name__ == "__main__":
    B = 2
    cycle_len = 24
    channel_size = 32

    key = jax.random.PRNGKey(0)
    # Module inits the parameter to zeros (would make the check trivial), so use
    # a seeded normal instead.
    data = jax.random.normal(key, (cycle_len, channel_size), dtype=jnp.float32)
    # Deterministic indices; first one forces a wrap around cycle_len.
    index = jnp.array([cycle_len - 3, 5], dtype=jnp.int32)

    # Case 1: length < cycle_len (exercises the wrap via compare/select).
    length1 = 8
    out1 = jax.block_until_ready(recurrent_cycle(index, data, length1))
    ref1 = recurrent_cycle_ref(index, data, length1)
    assert out1.shape == (B, length1, channel_size), out1.shape
    assert jnp.allclose(out1, ref1, atol=1e-6), "mismatch vs reference (length=8)"

    # Case 2: length > cycle_len (exercises the t % cycle_len path).
    length2 = 40
    out2 = jax.block_until_ready(recurrent_cycle(index, data, length2))
    ref2 = recurrent_cycle_ref(index, data, length2)
    assert out2.shape == (B, length2, channel_size), out2.shape
    assert jnp.allclose(out2, ref2, atol=1e-6), "mismatch vs reference (length=40)"

    print("KERNEL_OK")
</pallas_src>

<mosaic_0001>
module attributes {stable_mosaic.version = 11 : i64} {
  func.func @_recurrent_cycle_kernel(%arg0: i32, %arg1: memref<2xi32, #tpu.memory_space<smem>>, %arg2: memref<24x32xf32, #tpu.memory_space<vmem>>, %arg3: memref<2x8x32xf32, #tpu.memory_space<vmem>>) attributes {dimension_semantics = [#tpu.dimension_semantics<parallel>], iteration_bounds = array<i64: 1>, scalar_prefetch = 1 : i64, scratch_operands = 0 : i64, tpu.core_type = #tpu.core_type<tc>, window_params = [{pipeline_mode = #tpu.pipeline_mode<synchronous>, transform_indices = @transform_0, window_bounds = array<i64: 24, 32>}, {transform_indices = @transform_1, window_bounds = array<i64: 2, 8, 32>}]} {
    %c0 = arith.constant 0 : index
    %c0_0 = arith.constant 0 : index
    %0 = vector.load %arg2[%c0, %c0_0] : memref<24x32xf32, #tpu.memory_space<vmem>>, vector<24x32xf32>
    %1 = tpu.iota {dimensions = array<i32: 0>} : vector<8x1xi32>
    %c24_i32 = arith.constant 24 : i32
    %2 = vector.broadcast %c24_i32 : i32 to vector<8x1xi32>
    %3 = arith.remsi %1, %2 : vector<8x1xi32>
    %4 = tpu.iota {dimensions = array<i32: 1>} : vector<8x24xi32>
    %c2_i32 = arith.constant 2 : i32
    %5 = arith.muli %arg0, %c2_i32 : i32
    %c0_i32 = arith.constant 0 : i32
    %6 = arith.addi %5, %c0_i32 : i32
    %7 = arith.index_cast %6 : i32 to index
    %8 = memref.load %arg1[%7] : memref<2xi32, #tpu.memory_space<smem>>
    %c24_i32_1 = arith.constant 24 : i32
    %c0_i32_2 = arith.constant 0 : i32
    %9 = arith.cmpi eq, %c24_i32_1, %c0_i32_2 : i32
    %c1_i32 = arith.constant 1 : i32
    %10 = arith.select %9, %c1_i32, %c24_i32_1 : i32
    %11 = arith.remsi %8, %10 : i32
    %c0_i32_3 = arith.constant 0 : i32
    %12 = arith.cmpi ne, %11, %c0_i32_3 : i32
    %c0_i32_4 = arith.constant 0 : i32
    %13 = arith.cmpi slt, %11, %c0_i32_4 : i32
    %c0_i32_5 = arith.constant 0 : i32
    %14 = arith.cmpi slt, %10, %c0_i32_5 : i32
    %15 = arith.xori %13, %14 : i1
    %16 = arith.andi %15, %12 : i1
    %17 = arith.addi %11, %10 : i32
    %18 = arith.select %16, %17, %11 : i32
    %19 = vector.broadcast %18 : i32 to vector<8x1xi32>
    %20 = arith.addi %19, %3 : vector<8x1xi32>
    %c24_i32_6 = arith.constant 24 : i32
    %21 = vector.broadcast %c24_i32_6 : i32 to vector<8x1xi32>
    %22 = arith.cmpi sge, %20, %21 : vector<8x1xi32>
    %c24_i32_7 = arith.constant 24 : i32
    %23 = vector.broadcast %c24_i32_7 : i32 to vector<8x1xi32>
    %24 = arith.subi %20, %23 : vector<8x1xi32>
    %25 = arith.select %22, %24, %20 : vector<8x1xi1>, vector<8x1xi32>
    %26 = vector.broadcast %25 : vector<8x1xi32> to vector<8x24xi32>
    %27 = arith.cmpi eq, %26, %4 : vector<8x24xi32>
    %28 = arith.extui %27 : vector<8x24xi1> to vector<8x24xi32>
    %29 = arith.sitofp %28 : vector<8x24xi32> to vector<8x24xf32>
    %cst = arith.constant dense<0.000000e+00> : vector<8x32xf32>
    %30 = tpu.matmul %29, %0, %cst {dimension_numbers = #tpu.dot_dimension_numbers<[1], [0], [0], [1], [0, 0, 1, 1], [], []>} : vector<8x24xf32>, vector<24x32xf32>, vector<8x32xf32> -> vector<8x32xf32>
    %c0_8 = arith.constant 0 : index
    %c0_9 = arith.constant 0 : index
    %c0_10 = arith.constant 0 : index
    %31 = vector.load %arg3[%c0_8, %c0_9, %c0_10] : memref<2x8x32xf32, #tpu.memory_space<vmem>>, vector<1x8x32xf32>
    %32 = vector.shape_cast %31 : vector<1x8x32xf32> to vector<8x32xf32>
    %33 = vector.shape_cast %30 : vector<8x32xf32> to vector<1x8x32xf32>
    tpu.vector_store %arg3[%c0_8, %c0_9, %c0_10], %33 {strides = array<i32>} : memref<2x8x32xf32, #tpu.memory_space<vmem>>, vector<1x8x32xf32>,
    %c2_i32_11 = arith.constant 2 : i32
    %34 = arith.muli %arg0, %c2_i32_11 : i32
    %c1_i32_12 = arith.constant 1 : i32
    %35 = arith.addi %34, %c1_i32_12 : i32
    %36 = arith.index_cast %35 : i32 to index
    %37 = memref.load %arg1[%36] : memref<2xi32, #tpu.memory_space<smem>>
    %c24_i32_13 = arith.constant 24 : i32
    %c0_i32_14 = arith.constant 0 : i32
    %38 = arith.cmpi eq, %c24_i32_13, %c0_i32_14 : i32
    %c1_i32_15 = arith.constant 1 : i32
    %39 = arith.select %38, %c1_i32_15, %c24_i32_13 : i32
    %40 = arith.remsi %37, %39 : i32
    %c0_i32_16 = arith.constant 0 : i32
    %41 = arith.cmpi ne, %40, %c0_i32_16 : i32
    %c0_i32_17 = arith.constant 0 : i32
    %42 = arith.cmpi slt, %40, %c0_i32_17 : i32
    %c0_i32_18 = arith.constant 0 : i32
    %43 = arith.cmpi slt, %39, %c0_i32_18 : i32
    %44 = arith.xori %42, %43 : i1
    %45 = arith.andi %44, %41 : i1
    %46 = arith.addi %40, %39 : i32
    %47 = arith.select %45, %46, %40 : i32
    %48 = vector.broadcast %47 : i32 to vector<8x1xi32>
    %49 = arith.addi %48, %3 : vector<8x1xi32>
    %c24_i32_19 = arith.constant 24 : i32
    %50 = vector.broadcast %c24_i32_19 : i32 to vector<8x1xi32>
    %51 = arith.cmpi sge, %49, %50 : vector<8x1xi32>
    %c24_i32_20 = arith.constant 24 : i32
    %52 = vector.broadcast %c24_i32_20 : i32 to vector<8x1xi32>
    %53 = arith.subi %49, %52 : vector<8x1xi32>
    %54 = arith.select %51, %53, %49 : vector<8x1xi1>, vector<8x1xi32>
    %55 = vector.broadcast %54 : vector<8x1xi32> to vector<8x24xi32>
    %56 = arith.cmpi eq, %55, %4 : vector<8x24xi32>
    %57 = arith.extui %56 : vector<8x24xi1> to vector<8x24xi32>
    %58 = arith.sitofp %57 : vector<8x24xi32> to vector<8x24xf32>
    %cst_21 = arith.constant dense<0.000000e+00> : vector<8x32xf32>
    %59 = tpu.matmul %58, %0, %cst_21 {dimension_numbers = #tpu.dot_dimension_numbers<[1], [0], [0], [1], [0, 0, 1, 1], [], []>} : vector<8x24xf32>, vector<24x32xf32>, vector<8x32xf32> -> vector<8x32xf32>
    %c1 = arith.constant 1 : index
    %c0_22 = arith.constant 0 : index
    %c0_23 = arith.constant 0 : index
    %60 = vector.load %arg3[%c1, %c0_22, %c0_23] : memref<2x8x32xf32, #tpu.memory_space<vmem>>, vector<1x8x32xf32>
    %61 = vector.shape_cast %60 : vector<1x8x32xf32> to vector<8x32xf32>
    %62 = vector.shape_cast %59 : vector<8x32xf32> to vector<1x8x32xf32>
    tpu.vector_store %arg3[%c1, %c0_22, %c0_23], %62 {strides = array<i32>} : memref<2x8x32xf32, #tpu.memory_space<vmem>>, vector<1x8x32xf32>,
    return
  }
  func.func @transform_0(%arg0: i32, %arg1: memref<2xi32, #tpu.memory_space<smem>>) -> (i32, i32) {
    %c0_i32 = arith.constant 0 : i32
    %c0_i32_0 = arith.constant 0 : i32
    %c0_i32_1 = arith.constant 0 : i32
    return %c0_i32, %c0_i32_0 : i32, i32
  }
  func.func @transform_1(%arg0: i32, %arg1: memref<2xi32, #tpu.memory_space<smem>>) -> (i32, i32, i32) {
    %c0_i32 = arith.constant 0 : i32
    %c0_i32_0 = arith.constant 0 : i32
    %c0_i32_1 = arith.constant 0 : i32
    return %arg0, %c0_i32, %c0_i32_0 : i32, i32, i32
  }
}

</mosaic_0001>

<llo_original>
// kernel: tpu_custom_call.1
$region0: #{tpu_custom_call.1}
  #allocation0 [shape = 'u32[]', space=smem, size = 0x4, offset = 0x4, fixed_abs, tag = 'smem constant byte address 0x4 - core index']
  #allocation1 [shape = 'u32[144,128]{1,0:T(1,128)}', space=vmem, size = 0x12000, scoped, tag = 'internal scratch']
  #allocation2 [shape = 's32[1]{0}', space=sflag, size = 0x4, scoped, tag = 'scoped memory for tpu_custom_call.1']
  #allocation3 [shape = 'u8[512]{0}', space=smem, size = 0x200, scoped, tag = 'prefetched SMEM operand 0']
  %s0 = inlined_call_operand.hbm [shape: s32[2], index: 0, kind: input, shape index: {}]
  %s1 = inlined_call_operand.hbm [shape: f32[24,32], index: 1, kind: input, shape index: {}]
  %s2 = inlined_call_operand.hbm [shape: f32[2,8,32], index: 2, kind: output, shape index: {}]
  %s3 = sld [smem:[#allocation0]]
  $region18: #{tpu_custom_call.1} parent=0
    _
  %s5 = ssub.s32 1, %s3
  %s6 = scalar_select 0, %s5, %s3
  %8 = dma.hbm_to_smem %s0, 16, [#allocation3], [#allocation2]
  %9 = dma.done [#allocation2], 16
  %10 = sfence
  $region1: #{tpu_custom_call.1} parent=0
    #allocation4 [shape = 'u8[12288]{0}', space=vmem, size = 0x3000, scoped, tag = 'input window, operand 1, single buffered']
    #allocation5 [shape = 's32[1]{0}', space=sflag, size = 0x4, scoped, tag = 'scoped memory for tpu_custom_call.1']
    #allocation6 [shape = 's32[1]{0}', space=sflag, size = 0x4, scoped, tag = 'scoped memory for tpu_custom_call.1']
    #allocation7 [shape = 'u8[8192]{0}', space=vmem, size = 0x2000, scoped, tag = 'output window, operand 0, single buffered']
    %11 = vsyncpa [#allocation5], 0
    %12 = vsyncpa [#allocation6], 0
    // Predicated region
    $region2: #{tpu_custom_call.1} parent=1 // pred_check
      _
    $region3: #{tpu_custom_call.1} parent=1 // pred_check_branch
      %14 = sbr.rel (0) target = $region5
    $region4: #{tpu_custom_call.1} parent=1 // pred_region
      %s16 = ssub.s32 384, 384
      %17 = vsyncadd [#allocation5], %s16
      %s18 = sshll.u32 [#allocation4], 4
      %s19 = int_to_ptr.vmem [resolvable:$true] %s18
      %24 = dma.hbm_to_vmem [thread:$0]  %s1, 384, %s19, [#allocation5], 128, 128, 8
    $region5: #{tpu_custom_call.1} parent=1 // pred_fallthru
      _
    // Predicated region
    $region6: #{tpu_custom_call.1} parent=1 // pred_check
      _
    $region7: #{tpu_custom_call.1} parent=1 // pred_check_branch
      %26 = sbr.rel (0) target = $region9
    $region8: #{tpu_custom_call.1} parent=1 // pred_region
      %27 = dma.done [#allocation5], 384
    $region9: #{tpu_custom_call.1} parent=1 // pred_fallthru
      _
    %v28 = vld [vmem:[#allocation4] sm:$0xff]
    %v29 = vld [vmem:[#allocation4 + $0x8] sm:$0xff]
    %v30 = vld [vmem:[#allocation4 + $0x10] sm:$0xff]
    %v31 = vlaneseq
    %v32 = vshrl.u32 %v31, 7
    %vm33 = vcmp.lt.s32.totalorder %v32, 0
    %v34 = vsub.s32 0, %v32
    %v35 = vsel %vm33, %v34, %v32
    %v36 = vmul.u32.u64.compose %v35, 2863311531
    %v37 = vextract.low.u32 %v36
    %v38 = vextract.high.u32 %v36
    %v39 = vshrl.u32 %v38, 4
    %v40 = vmul.u32 %v39, 24
    %v41 = vsub.s32 %v35, %v40
    %v42 = vsub.s32 0, %v41
    %v43 = vsel %vm33, %v42, %v41
    %v44 = vlaneseq
    %v45 = vand.u32 %v44, 127
    %s46 = smul.u32 0, 2
    %s47 = sld [smem:[#allocation3 + %s46]]
    %p48 = scmp.lt.s32.totalorder %s47, 0
    %s49 = ssub.s32 0, %s47
    %s50 = scalar_select %p48, %s49, %s47
    %s51 = sdiv.u32.pop %s50, 24
    %s52 = srem.u32.pop %s50, 24
    %s53 = ssub.s32 0, %s52
    %s54 = scalar_select %p48, %s53, %s52
    %p55 = scmp.ne.s32.totalorder %s54, 0
    %p56 = scmp.lt.s32.totalorder %s54, 0
    %p57 = pnand %p56, %p55
    %p58 = pneg %p57
    %s59 = sadd.s32 %s54, 24
    %s60 = scalar_select %p58, %s59, %s54
    %v61 = vstv %s60
    %v62 = vadd.s32 %v61, %v43
    %vm63 = vcmp.ge.s32.totalorder %v62, 24
    %v64 = vsub.s32 %v62, 24
    %v65 = vsel %vm63, %v64, %v62
    %vm66 = vcmp.eq.s32.totalorder %v65, %v45
    %v67 = vsel %vm66, 1, 0
    %v68 = vcvt.s32.f32 %v67
    %vm69 = vcmask 195584
    %v71 = vsel %vm69, %v68, 0
    %73 = vmatprep.subr.mxu0 0.0
    %74 = vmatpush1.msra.mxu0 %v28
    %75 = vmatprep.subr.mxu0 0.0
    %76 = vmatpush1.msra.mxu0 %v29
    %77 = vmatprep.subr.mxu0 0.0
    %78 = vmatpush1.msra.mxu0 %v30
    %79 = vmatprep.subr.mxu0 0.0
    %80 = vmatpush1.msra.mxu0 0.0
    %81 = vmatprep.subr.mxu0 0.0
    %82 = vmatpush1.msra.mxu0 0.0
    %83 = vmatprep.subr.mxu0 0.0
    %84 = vmatpush1.msra.mxu0 0.0
    %85 = vmatprep.subr.mxu0 0.0
    %86 = vmatpush1.msra.mxu0 0.0
    %87 = vmatprep.subr.mxu0 0.0
    %88 = vmatpush1.msra.mxu0 0.0
    %89 = vmatprep.subr.mxu0 0.0
    %90 = vmatpush1.msra.mxu0 0.0
    %91 = vmatprep.subr.mxu0 0.0
    %92 = vmatpush1.msra.mxu0 0.0
    %93 = vmatprep.subr.mxu0 0.0
    %94 = vmatpush1.msra.mxu0 0.0
    %95 = vmatprep.subr.mxu0 0.0
    %96 = vmatpush1.msra.mxu0 0.0
    %97 = vmatprep.subr.mxu0 0.0
    %98 = vmatpush1.msra.mxu0 0.0
    %99 = vmatprep.subr.mxu0 0.0
    %100 = vmatpush1.msra.mxu0 0.0
    %101 = vmatprep.subr.mxu0 0.0
    %102 = vmatpush1.msra.mxu0 0.0
    %103 = vmatprep.subr.mxu0 0.0
    %104 = vmatpush1.msra.mxu0 0.0
    %105 = vmatprep.subr.mxu0 0.0
    %106 = vmatpush1.msra.mxu0 0.0
    %107 = vmatprep.subr.mxu0 0.0
    %108 = vmatpush1.msra.mxu0 0.0
    %109 = vmatprep.subr.mxu0 0.0
    %110 = vmatpush1.msra.mxu0 0.0
    %111 = vmatprep.subr.mxu0 0.0
    %112 = vmatpush1.msra.mxu0 0.0
    %113 = vmatprep.subr.mxu0 0.0
    %114 = vmatpush1.msra.mxu0 0.0
    %115 = vmatprep.subr.mxu0 0.0
    %116 = vmatpush1.msra.mxu0 0.0
    %117 = vmatprep.subr.mxu0 0.0
    %118 = vmatpush1.msra.mxu0 0.0
    %119 = vmatprep.subr.mxu0 0.0
    %120 = vmatpush1.msra.mxu0 0.0
    %121 = vmatprep.subr.mxu0 0.0
    %122 = vmatpush1.msra.mxu0 0.0
    %123 = vmatprep.subr.mxu0 0.0
    %124 = vmatpush1.msra.mxu0 0.0
    %125 = vmatprep.subr.mxu0 0.0
    %126 = vmatpush1.msra.mxu0 0.0
    %127 = vmatprep.subr.mxu0 0.0
    %128 = vmatpush1.msra.mxu0 0.0
    %129 = vmatprep.subr.mxu0 0.0
    %130 = vmatpush1.msra.mxu0 0.0
    %131 = vmatprep.subr.mxu0 0.0
    %132 = vmatpush1.msra.mxu0 0.0
    %133 = vmatprep.subr.mxu0 0.0
    %134 = vmatpush1.msra.mxu0 0.0
    %135 = vmatprep.subr.mxu0 0.0
    %136 = vmatpush1.msra.mxu0 0.0
    %137 = vmatprep.mubr.f32.mxu0 0.0
    %138 = vmatmul.mubr.f32.gmra.mrb[0].mxu0 %v71
    %v139 = vpop.f32.mrb[0].mxu0
    %v140 = vadd.f32 0.0, %v139
    %v141 = vpop.f32.mrb[0].mxu0
    %142 = vdwg.mxu0
    %vm143 = vcmask 261120
    %144 = vst.msk [vmem:[#allocation7] sm:$0xff] %vm143, %v140
    %s145 = sadd.s32 %s46, 1
    %s146 = sld [smem:[#allocation3 + %s145]]
    %p147 = scmp.lt.s32.totalorder %s146, 0
    %s148 = ssub.s32 0, %s146
    %s149 = scalar_select %p147, %s148, %s146
    %s150 = sdiv.u32.pop %s149, 24
    %s151 = srem.u32.pop %s149, 24
    %s152 = ssub.s32 0, %s151
    %s153 = scalar_select %p147, %s152, %s151
    %p154 = scmp.ne.s32.totalorder %s153, 0
    %p155 = scmp.lt.s32.totalorder %s153, 0
    %p156 = pnand %p155, %p154
    %p157 = pneg %p156
    %s158 = sadd.s32 %s153, 24
    %s159 = scalar_select %p157, %s158, %s153
    %v160 = vstv %s159
    %v161 = vadd.s32 %v160, %v43
    %vm162 = vcmp.ge.s32.totalorder %v161, 24
    %v163 = vsub.s32 %v161, 24
    %v164 = vsel %vm162, %v163, %v161
    %vm165 = vcmp.eq.s32.totalorder %v164, %v45
    %v166 = vsel %vm165, 1, 0
    %v167 = vcvt.s32.f32 %v166
    %v169 = vsel %vm69, %v167, 0
    %171 = vmatprep.subr.mxu0 0.0
    %172 = vmatpush1.msra.mxu0 %v28
    %173 = vmatprep.subr.mxu0 0.0
    %174 = vmatpush1.msra.mxu0 %v29
    %175 = vmatprep.subr.mxu0 0.0
    %176 = vmatpush1.msra.mxu0 %v30
    %177 = vmatprep.subr.mxu0 0.0
    %178 = vmatpush1.msra.mxu0 0.0
    %179 = vmatprep.subr.mxu0 0.0
    %180 = vmatpush1.msra.mxu0 0.0
    %181 = vmatprep.subr.mxu0 0.0
    %182 = vmatpush1.msra.mxu0 0.0
    %183 = vmatprep.subr.mxu0 0.0
    %184 = vmatpush1.msra.mxu0 0.0
    %185 = vmatprep.subr.mxu0 0.0
    %186 = vmatpush1.msra.mxu0 0.0
    %187 = vmatprep.subr.mxu0 0.0
    %188 = vmatpush1.msra.mxu0 0.0
    %189 = vmatprep.subr.mxu0 0.0
    %190 = vmatpush1.msra.mxu0 0.0
    %191 = vmatprep.subr.mxu0 0.0
    %192 = vmatpush1.msra.mxu0 0.0
    %193 = vmatprep.subr.mxu0 0.0
    %194 = vmatpush1.msra.mxu0 0.0
    %195 = vmatprep.subr.mxu0 0.0
    %196 = vmatpush1.msra.mxu0 0.0
    %197 = vmatprep.subr.mxu0 0.0
    %198 = vmatpush1.msra.mxu0 0.0
    %199 = vmatprep.subr.mxu0 0.0
    %200 = vmatpush1.msra.mxu0 0.0
    %201 = vmatprep.subr.mxu0 0.0
    %202 = vmatpush1.msra.mxu0 0.0
    %203 = vmatprep.subr.mxu0 0.0
    %204 = vmatpush1.msra.mxu0 0.0
    %205 = vmatprep.subr.mxu0 0.0
    %206 = vmatpush1.msra.mxu0 0.0
    %207 = vmatprep.subr.mxu0 0.0
    %208 = vmatpush1.msra.mxu0 0.0
    %209 = vmatprep.subr.mxu0 0.0
    %210 = vmatpush1.msra.mxu0 0.0
    %211 = vmatprep.subr.mxu0 0.0
    %212 = vmatpush1.msra.mxu0 0.0
    %213 = vmatprep.subr.mxu0 0.0
    %214 = vmatpush1.msra.mxu0 0.0
    %215 = vmatprep.subr.mxu0 0.0
    %216 = vmatpush1.msra.mxu0 0.0
    %217 = vmatprep.subr.mxu0 0.0
    %218 = vmatpush1.msra.mxu0 0.0
    %219 = vmatprep.subr.mxu0 0.0
    %220 = vmatpush1.msra.mxu0 0.0
    %221 = vmatprep.subr.mxu0 0.0
    %222 = vmatpush1.msra.mxu0 0.0
    %223 = vmatprep.subr.mxu0 0.0
    %224 = vmatpush1.msra.mxu0 0.0
    %225 = vmatprep.subr.mxu0 0.0
    %226 = vmatpush1.msra.mxu0 0.0
    %227 = vmatprep.subr.mxu0 0.0
    %228 = vmatpush1.msra.mxu0 0.0
    %229 = vmatprep.subr.mxu0 0.0
    %230 = vmatpush1.msra.mxu0 0.0
    %231 = vmatprep.subr.mxu0 0.0
    %232 = vmatpush1.msra.mxu0 0.0
    %233 = vmatprep.subr.mxu0 0.0
    %234 = vmatpush1.msra.mxu0 0.0
    %235 = vmatprep.mubr.f32.mxu0 0.0
    %236 = vmatmul.mubr.f32.gmra.mrb[0].mxu0 %v169
    %v237 = vpop.f32.mrb[0].mxu0
    %v238 = vadd.f32 0.0, %v237
    %v239 = vpop.f32.mrb[0].mxu0
    %240 = vdwg.mxu0
    %s241 = scalar_lea.vmem [#allocation7], 8
    %242 = vst.msk [vmem:[%s241] sm:$0xff] %vm143, %v238
    // Predicated region
    $region10: #{tpu_custom_call.1} parent=1 // pred_check
      _
    $region11: #{tpu_custom_call.1} parent=1 // pred_check_branch
      %244 = sbr.rel (0) target = $region13
    $region12: #{tpu_custom_call.1} parent=1 // pred_region
      %s246 = ssub.s32 256, 256
      %247 = vsyncadd [#allocation6], %s246
      %s248 = sshll.u32 [#allocation7], 4
      %s249 = int_to_ptr.vmem [resolvable:$true] %s248
      %254 = dma.vmem_to_hbm [thread:$0]  %s249, 256, %s2, [#allocation6], 128, 128, 8
    $region13: #{tpu_custom_call.1} parent=1 // pred_fallthru
      _
    // Predicated region
    $region14: #{tpu_custom_call.1} parent=1 // pred_check
      _
    $region15: #{tpu_custom_call.1} parent=1 // pred_check_branch
      %256 = sbr.rel (0) target = $region17
    $region16: #{tpu_custom_call.1} parent=1 // pred_region
      %257 = dma.done [#allocation6], 256
    $region17: #{tpu_custom_call.1} parent=1 // pred_fallthru
      _
    %258 = vsyncpa [#allocation5], 1
    %259 = vsyncpa [#allocation6], 1

</llo_original>
